<compile_context>
chip_gen: v7x
topology: tpu7x:2x2x1
jax: 0.10.0
libtpu: 0.0.40
codegen_flags: <defaults>
</compile_context>

<pallas_src>
import functools

import jax
import jax.numpy as jnp
from jax.experimental import pallas as pl
from jax.experimental.pallas import tpu as pltpu

MIB = 1024 * 1024


def _round_up(x, m):
    return ((x + m - 1) // m) * m


def _pad2d(x, rows, cols):
    r, c = x.shape
    if r == rows and c == cols:
        return x
    return jnp.pad(x, ((0, rows - r), (0, cols - c)))


def _vmem_capacity_bytes():
    try:
        return int(pltpu.get_tpu_info().vmem_capacity_bytes)
    except Exception:
        return 64 * MIB  # conservative: v7x per-TensorCore VMEM


def _vmem_limit(footprint_bytes, capacity):
    want = int(footprint_bytes * 1.5) + 2 * MIB
    return int(max(16 * MIB, min(want, int(capacity * 0.75))))


def _choose_tiles(n):
    """A_hat tile (tm, tk): multiples of 128, both dividing the padded node dim."""
    n128 = _round_up(max(int(n), 1), 128)
    if n128 >= 4096:
        # Large graph: 1024x2048 bf16 A tile (4 MiB) amortizes per-step overhead
        # on every generation and keeps >= 2 dst-row tiles for v7x megacore.
        return 1024, 2048
    # Small/medium graph: single k tile; largest power-of-two row tile that still
    # leaves >= 2 row tiles (v7x megacore) whenever possible.
    tk = n128
    tm = 128
    while tm * 2 <= min(1024, n128 // 2) and n128 % (tm * 2) == 0:
        tm *= 2
    return tm, tk


# ---------------------------------------------------------------------------
# Kernel 1: per-layer feature transform  HW = H @ W   (bf16 MXU, computed once)
# ---------------------------------------------------------------------------
def _feature_transform_kernel(h_ref, w_ref, o_ref):
    o_ref[...] = jnp.dot(
        h_ref[...], w_ref[...], preferred_element_type=jnp.float32
    ).astype(o_ref.dtype)


def feature_transform(h_bf16, w_bf16, *, tm, vmem_capacity):
    n_pad, f_in = h_bf16.shape
    f_out = w_bf16.shape[1]
    footprint = 2 * (tm * f_in * 2 + f_in * f_out * 2 + tm * f_out * 2)
    return pl.pallas_call(
        _feature_transform_kernel,
        out_shape=jax.ShapeDtypeStruct((n_pad, f_out), jnp.bfloat16),
        grid=(n_pad // tm,),
        in_specs=[
            pl.BlockSpec((tm, f_in), lambda i: (i, 0)),      # full f_in (no 128 pad)
            pl.BlockSpec((f_in, f_out), lambda i: (0, 0)),   # W resident
        ],
        out_specs=pl.BlockSpec((tm, f_out), lambda i: (i, 0)),
        compiler_params=pltpu.CompilerParams(
            dimension_semantics=("parallel",),
            vmem_limit_bytes=_vmem_limit(footprint, vmem_capacity),
        ),
        cost_estimate=pl.CostEstimate(
            flops=2 * n_pad * f_in * f_out,
            transcendentals=0,
            bytes_accessed=n_pad * f_in * 2 + f_in * f_out * 2 + n_pad * f_out * 2,
        ),
    )(h_bf16, w_bf16)


# ---------------------------------------------------------------------------
# Kernel 2: block-sparse tiled aggregation  out = A_hat @ HW + b  (+ ReLU)
# ---------------------------------------------------------------------------
def _aggregate_kernel(nz_ref, eff_ref, a_ref, hw_ref, b_ref, o_ref, acc_ref, *,
                      apply_relu, tk, hw_resident):
    del eff_ref  # only used by the index_maps (DMA dedup of empty tiles)
    i = pl.program_id(0)
    k = pl.program_id(1)

    @pl.when(k == 0)
    def _():
        acc_ref[...] = jnp.zeros_like(acc_ref)

    # Skip MXU work for all-zero A_hat tiles (their DMA is elided by the
    # eff_ref-redirected index_map returning the previous block index).
    @pl.when(nz_ref[i, k] != 0)
    def _():
        if hw_resident:
            start = pl.multiple_of(k * tk, 128)
            hw = hw_ref[pl.ds(start, tk), :]
        else:
            hw = hw_ref[...]
        acc_ref[...] += jnp.dot(a_ref[...], hw, preferred_element_type=jnp.float32)

    @pl.when(k == pl.num_programs(1) - 1)
    def _():
        out = acc_ref[...] + b_ref[...]
        if apply_relu:  # torch.nn.ReLU (prelu=False)
            out = jnp.maximum(out, 0.0)
        o_ref[...] = out.astype(o_ref.dtype)


def aggregate(a_bf16, hw_bf16, b, nz, eff, *, tm, tk, apply_relu, out_dtype,
              vmem_capacity):
    n_pad = a_bf16.shape[0]
    f_out = hw_bf16.shape[1]
    n_row = n_pad // tm
    n_k = n_pad // tk
    out_itemsize = jnp.dtype(out_dtype).itemsize

    hw_bytes = n_pad * f_out * 2
    # Keep HW fully VMEM-resident (single DMA, no per-row-tile re-stream) when
    # its double-buffered footprint fits a quarter of this chip's VMEM.
    hw_resident = 2 * hw_bytes <= vmem_capacity // 4

    if hw_resident:
        hw_spec = pl.BlockSpec((n_pad, f_out), lambda i, k, nz_r, eff_r: (0, 0))
        hw_vmem = 2 * hw_bytes
        hw_stream_bytes = hw_bytes
    else:
        hw_spec = pl.BlockSpec((tk, f_out),
                               lambda i, k, nz_r, eff_r: (eff_r[i, k], 0))
        hw_vmem = 2 * tk * f_out * 2
        hw_stream_bytes = n_row * hw_bytes

    footprint = (2 * tm * tk * 2          # A_hat double-buffered (bf16)
                 + hw_vmem                # HW
                 + 2 * f_out * 4          # bias
                 + 2 * tm * f_out * out_itemsize  # output
                 + tm * f_out * 4)        # f32 accumulator scratch

    kernel = functools.partial(_aggregate_kernel, apply_relu=apply_relu,
                               tk=tk, hw_resident=hw_resident)
    return pl.pallas_call(
        kernel,
        out_shape=jax.ShapeDtypeStruct((n_pad, f_out), out_dtype),
        grid_spec=pltpu.PrefetchScalarGridSpec(
            num_scalar_prefetch=2,          # nz mask + redirected k indices (SMEM)
            grid=(n_row, n_k),
            in_specs=[
                # Empty tiles re-use the previously fetched tile index -> DMA elided.
                pl.BlockSpec((tm, tk), lambda i, k, nz_r, eff_r: (i, eff_r[i, k])),
                hw_spec,
                pl.BlockSpec((1, f_out), lambda i, k, nz_r, eff_r: (0, 0)),
            ],
            out_specs=pl.BlockSpec((tm, f_out), lambda i, k, nz_r, eff_r: (i, 0)),
            scratch_shapes=[pltpu.VMEM((tm, f_out), jnp.float32)],
        ),
        compiler_params=pltpu.CompilerParams(
            dimension_semantics=("parallel", "arbitrary"),
            vmem_limit_bytes=_vmem_limit(footprint, vmem_capacity),
        ),
        cost_estimate=pl.CostEstimate(
            flops=2 * n_pad * n_pad * f_out,
            transcendentals=0,
            bytes_accessed=(n_pad * n_pad * 2        # A_hat (dense upper bound)
                            + hw_stream_bytes
                            + n_pad * f_out * out_itemsize
                            + f_out * 4),
        ),
    )(nz, eff, a_bf16, hw_bf16, b)


# ---------------------------------------------------------------------------
# Forward pass: mirrors GCN.forward defaults (use_linear=False, norm='identity',
# prelu=False, dropout=0.0 -> identity, return_all=False).
# ---------------------------------------------------------------------------
def gcn_forward(a_hat, features, params, *, encoder_mode=False, tm=None, tk=None):
    n = a_hat.shape[0]
    f_in = features.shape[1]
    vmem_capacity = _vmem_capacity_bytes()

    if tm is None or tk is None:
        tm_auto, tk_auto = _choose_tiles(n)
        tm = tm_auto if tm is None else tm
        tk = tk_auto if tk is None else tk
    n_pad = _round_up(_round_up(n, 128), max(tm, tk))
    assert n_pad % tm == 0 and n_pad % tk == 0, (n_pad, tm, tk)

    # Note: bf16 A_hat keeps ~3 significant digits of the D^-1/2 A D^-1/2 values;
    # acceptable here (validated vs f32 below), revisit for very deep stacks.
    a_pad = _pad2d(a_hat.astype(jnp.float32), n_pad, n_pad)
    n_row, n_k = n_pad // tm, n_pad // tk

    # Block-sparsity map of A_hat (shared across all layers).
    a4 = a_pad.reshape(n_row, tm, n_k, tk)
    nz = (jnp.max(jnp.abs(a4), axis=(1, 3)) > 0).astype(jnp.int32)      # (n_row, n_k)
    kids = jnp.broadcast_to(jnp.arange(n_k, dtype=jnp.int32)[None, :], (n_row, n_k))
    eff = jnp.maximum(jax.lax.cummax(jnp.where(nz > 0, kids, -1), axis=1), 0)
    eff = eff.astype(jnp.int32)
    a_bf = a_pad.astype(jnp.bfloat16)

    # Keep f_in at (near) true width: full-dim blocks are exempt from the 128 rule.
    f_in_pad = _round_up(f_in, 8)
    h = _pad2d(features.astype(jnp.float32), n_pad, f_in_pad).astype(jnp.bfloat16)

    n_layers = len(params)
    f_out_last = None
    for i, (w, b) in enumerate(params):
        fi, fo = w.shape
        fo_pad = _round_up(fo, 128)
        w_pad = _pad2d(w.astype(jnp.float32), h.shape[1], fo_pad).astype(jnp.bfloat16)
        b_pad = _pad2d(jnp.asarray(b, jnp.float32).reshape(1, -1), 1, fo_pad)

        # dropout(p=0.0) is the identity -> omitted.
        hw = feature_transform(h, w_pad, tm=tm, vmem_capacity=vmem_capacity)
        apply_relu = (i != n_layers - 1) or encoder_mode
        out_dtype = jnp.bfloat16 if i != n_layers - 1 else jnp.float32
        h = aggregate(a_bf, hw, b_pad, nz, eff, tm=tm, tk=tk,
                      apply_relu=apply_relu, out_dtype=out_dtype,
                      vmem_capacity=vmem_capacity)
        f_out_last = fo

    return h[:n, :f_out_last]


def build_normalized_adjacency(src, dst, n):
    # DGL GraphConv, norm='both', allow_zero_in_degree=True:
    #   A_hat = D_in^{-1/2} A D_out^{-1/2},  A[v, u] = 1 iff edge u -> v,
    #   degrees clamped to >= 1 (duplicate edges sum, matching DGL multigraphs).
    a = jnp.zeros((n, n), jnp.float32).at[dst, src].add(1.0)
    out_deg = jnp.clip(a.sum(axis=0), 1.0, None)
    in_deg = jnp.clip(a.sum(axis=1), 1.0, None)
    return a * (in_deg ** -0.5)[:, None] * (out_deg ** -0.5)[None, :]


def _make_params(key, dims):
    # GraphConv: xavier_uniform weight, zero bias.
    wkeys = jax.random.split(key, len(dims) - 1)
    params = []
    for kk, (fi, fo) in zip(wkeys, zip(dims[:-1], dims[1:])):
        limit = (6.0 / (fi + fo)) ** 0.5
        w = jax.random.uniform(kk, (fi, fo), jnp.float32, -limit, limit)
        b = jnp.zeros((1, fo), jnp.float32)
        params.append((w, b))
    return params


def _reference_matched(a_hat, features, params):
    # Pure-JAX reference matching the kernel's precision choices (bf16 A / H / W,
    # f32 MXU accumulation, bf16 intermediate layer outputs).
    a_bf = a_hat.astype(jnp.bfloat16)
    h = features.astype(jnp.bfloat16)
    for i, (w, b) in enumerate(params):
        hw = jnp.dot(h, w.astype(jnp.bfloat16),
                     preferred_element_type=jnp.float32).astype(jnp.bfloat16)
        out = jnp.dot(a_bf, hw, preferred_element_type=jnp.float32) + b.reshape(1, -1)
        if i != len(params) - 1:
            out = jnp.maximum(out, 0.0)
            h = out.astype(jnp.bfloat16)
        else:
            h = out
    return h


def _reference_f32(a_hat, features, params):
    h = features
    for i, (w, b) in enumerate(params):
        h = a_hat @ (h @ w) + b.reshape(1, -1)
        if i != len(params) - 1:
            h = jnp.maximum(h, 0.0)
    return h


if __name__ == "__main__":
    key = jax.random.PRNGKey(0)
    k1, k2, k3, k4, k5, k6, k7, k8 = jax.random.split(key, 8)

    # --- Test 1: tiny graph, auto tile selection (single tile) ----------------
    n_nodes, n_edges, in_feats, hidden_lst = 64, 256, 32, [32, 32]
    features = jax.random.normal(k1, (n_nodes, in_feats), jnp.float32)
    src = jax.random.randint(k2, (n_edges,), 0, n_nodes)
    dst = jax.random.randint(k3, (n_edges,), 0, n_nodes)
    a_hat = build_normalized_adjacency(src, dst, n_nodes)
    params = _make_params(k4, [in_feats] + hidden_lst)

    out = jax.block_until_ready(gcn_forward(a_hat, features, params))
    assert out.shape == (n_nodes, hidden_lst[-1])
    assert jnp.allclose(out, _reference_matched(a_hat, features, params),
                        atol=1e-3, rtol=1e-3)
    assert jnp.allclose(out, _reference_f32(a_hat, features, params),
                        atol=5e-2, rtol=5e-2)

    # --- Test 2: sparse 300-node graph, forced 128x128 tiles ------------------
    # (3x3 A tile grid with several all-zero tiles -> exercises the block-sparse
    #  skip / DMA-dedup path and the multi-k-tile accumulator.)
    n2, f2, hidden2 = 300, 16, [64, 32]
    feats2 = jax.random.normal(k5, (n2, f2), jnp.float32)
    src2 = jnp.concatenate([jax.random.randint(k6, (80,), 0, 120),
                            jax.random.randint(k7, (80,), 200, 280)])
    dst2 = jnp.concatenate([jax.random.randint(k7, (80,), 0, 120),
                            jax.random.randint(k8, (80,), 200, 280)])
    a_hat2 = build_normalized_adjacency(src2, dst2, n2)
    params2 = _make_params(k8, [f2] + hidden2)

    out2 = jax.block_until_ready(
        gcn_forward(a_hat2, feats2, params2, tm=128, tk=128))
    assert out2.shape == (n2, hidden2[-1])
    assert jnp.allclose(out2, _reference_matched(a_hat2, feats2, params2),
                        atol=1e-3, rtol=1e-3)
    assert jnp.allclose(out2, _reference_f32(a_hat2, feats2, params2),
                        atol=5e-2, rtol=5e-2)

    print("KERNEL_OK")
</pallas_src>

<mosaic_0001>
module attributes {stable_mosaic.version = 11 : i64} {
  func.func @_feature_transform_kernel(%arg0: i32, %arg1: memref<128x32xbf16, #tpu.memory_space<vmem>>, %arg2: memref<32x128xbf16, #tpu.memory_space<vmem>>, %arg3: memref<128x128xbf16, #tpu.memory_space<vmem>>) attributes {dimension_semantics = [#tpu.dimension_semantics<parallel>], iteration_bounds = array<i64: 1>, scalar_prefetch = 0 : i64, scratch_operands = 0 : i64, tpu.core_type = #tpu.core_type<tc>, window_params = [{transform_indices = @transform_0, window_bounds = array<i64: 128, 32>}, {pipeline_mode = #tpu.pipeline_mode<synchronous>, transform_indices = @transform_1, window_bounds = array<i64: 32, 128>}, {transform_indices = @transform_2, window_bounds = array<i64: 128, 128>}]} {
    %c0 = arith.constant 0 : index
    %c0_0 = arith.constant 0 : index
    %0 = vector.load %arg1[%c0, %c0_0] : memref<128x32xbf16, #tpu.memory_space<vmem>>, vector<128x32xbf16>
    %c0_1 = arith.constant 0 : index
    %c0_2 = arith.constant 0 : index
    %1 = vector.load %arg2[%c0_1, %c0_2] : memref<32x128xbf16, #tpu.memory_space<vmem>>, vector<32x128xbf16>
    %cst = arith.constant dense<0.000000e+00> : vector<128x128xf32>
    %2 = tpu.matmul %0, %1, %cst {dimension_numbers = #tpu.dot_dimension_numbers<[1], [0], [0], [1], [0, 0, 1, 1], [], []>} : vector<128x32xbf16>, vector<32x128xbf16>, vector<128x128xf32> -> vector<128x128xf32>
    %3 = arith.truncf %2 : vector<128x128xf32> to vector<128x128xbf16>
    %c0_3 = arith.constant 0 : index
    %c0_4 = arith.constant 0 : index
    %4 = vector.load %arg3[%c0_3, %c0_4] : memref<128x128xbf16, #tpu.memory_space<vmem>>, vector<128x128xbf16>
    tpu.vector_store %arg3[%c0_3, %c0_4], %3 {strides = array<i32>} : memref<128x128xbf16, #tpu.memory_space<vmem>>, vector<128x128xbf16>,
    return
  }
  func.func @transform_0(%arg0: i32) -> (i32, i32) {
    %c0_i32 = arith.constant 0 : i32
    %c0_i32_0 = arith.constant 0 : i32
    return %arg0, %c0_i32 : i32, i32
  }
  func.func @transform_1(%arg0: i32) -> (i32, i32) {
    %c0_i32 = arith.constant 0 : i32
    %c0_i32_0 = arith.constant 0 : i32
    %c0_i32_1 = arith.constant 0 : i32
    return %c0_i32, %c0_i32_0 : i32, i32
  }
  func.func @transform_2(%arg0: i32) -> (i32, i32) {
    %c0_i32 = arith.constant 0 : i32
    %c0_i32_0 = arith.constant 0 : i32
    return %arg0, %c0_i32 : i32, i32
  }
}

</mosaic_0001>

<llo_original>
// kernel: tpu_custom_call.1
$region0: #{tpu_custom_call.1}
  #allocation0 [shape = 'u32[]', space=smem, size = 0x4, offset = 0x4, fixed_abs, tag = 'smem constant byte address 0x4 - core index']
  #allocation1 [shape = 'u32[144,128]{1,0:T(1,128)}', space=vmem, size = 0x12000, scoped, tag = 'internal scratch']
  %s0 = inlined_call_operand.vmem [shape: bf16[128,32], index: 0, kind: input, shape index: {}]
  %s1 = inlined_call_operand.vmem [shape: bf16[32,128], index: 1, kind: input, shape index: {}]
  %s2 = inlined_call_operand.hbm [shape: bf16[128,128], index: 2, kind: output, shape index: {}]
  %s3 = sld [smem:[#allocation0]]
  $region18: #{tpu_custom_call.1} parent=0
    _
  %s5 = ssub.s32 1, %s3
  %s6 = scalar_select 0, %s5, %s3
  $region1: #{tpu_custom_call.1} parent=0
    #allocation2 [shape = 'u8[32768]{0}', space=vmem, size = 0x8000, scoped, tag = 'output window, operand 0, single buffered']
    #allocation3 [shape = 's32[1]{0}', space=sflag, size = 0x4, scoped, tag = 'scoped memory for tpu_custom_call.1']
    %7 = vsyncpa [#allocation3], 0
    // Predicated region
    $region2: #{tpu_custom_call.1} parent=1 // pred_check
      _
    $region3: #{tpu_custom_call.1} parent=1 // pred_check_branch
      %9 = sbr.rel (0) target = $region5
    $region4: #{tpu_custom_call.1} parent=1 // pred_region
      _
    $region5: #{tpu_custom_call.1} parent=1 // pred_fallthru
      _
    // Predicated region
    $region6: #{tpu_custom_call.1} parent=1 // pred_check
      _
    $region7: #{tpu_custom_call.1} parent=1 // pred_check_branch
      %11 = sbr.rel (0) target = $region9
    $region8: #{tpu_custom_call.1} parent=1 // pred_region
      _
    $region9: #{tpu_custom_call.1} parent=1 // pred_fallthru
      _
    %v13 = vld [vmem:[%s0] sm:$0xf]
    %v14 = vld [vmem:[%s0 + $0x4] sm:$0xf]
    %v15 = vld [vmem:[%s0 + $0x8] sm:$0xf]
    %v16 = vld [vmem:[%s0 + $0xc] sm:$0xf]
    %v17 = vld [vmem:[%s0 + $0x10] sm:$0xf]
    %v18 = vld [vmem:[%s0 + $0x14] sm:$0xf]
    %v19 = vld [vmem:[%s0 + $0x18] sm:$0xf]
    %v20 = vld [vmem:[%s0 + $0x1c] sm:$0xf]
    %v21 = vld [vmem:[%s0 + $0x20] sm:$0xf]
    %v22 = vld [vmem:[%s0 + $0x24] sm:$0xf]
    %v23 = vld [vmem:[%s0 + $0x28] sm:$0xf]
    %v24 = vld [vmem:[%s0 + $0x2c] sm:$0xf]
    %v25 = vld [vmem:[%s0 + $0x30] sm:$0xf]
    %v26 = vld [vmem:[%s0 + $0x34] sm:$0xf]
    %v27 = vld [vmem:[%s0 + $0x38] sm:$0xf]
    %v28 = vld [vmem:[%s0 + $0x3c] sm:$0xf]
    %v29 = vld [vmem:[%s1] sm:$0xf]
    %v30 = vld [vmem:[%s1 + $0x4] sm:$0xf]
    %v31 = vld [vmem:[%s1 + $0x8] sm:$0xf]
    %v32 = vld [vmem:[%s1 + $0xc] sm:$0xf]
    %v49 = vunpack.c.l.b16 %v13
    %v50 = vunpack.c.l.b16 %v14
    %v51 = vunpack.c.l.b16 %v15
    %v52 = vunpack.c.l.b16 %v16
    %v53 = vunpack.c.l.b16 %v17
    %v54 = vunpack.c.l.b16 %v18
    %v55 = vunpack.c.l.b16 %v19
    %v56 = vunpack.c.l.b16 %v20
    %v57 = vunpack.c.l.b16 %v21
    %v58 = vunpack.c.l.b16 %v22
    %v59 = vunpack.c.l.b16 %v23
    %v60 = vunpack.c.l.b16 %v24
    %v61 = vunpack.c.l.b16 %v25
    %v62 = vunpack.c.l.b16 %v26
    %v63 = vunpack.c.l.b16 %v27
    %v64 = vunpack.c.l.b16 %v28
    %v65 = vpack.c.b16 %v50, %v49
    %v66 = vpack.c.b16 %v52, %v51
    %v67 = vpack.c.b16 %v54, %v53
    %v68 = vpack.c.b16 %v56, %v55
    %v69 = vpack.c.b16 %v58, %v57
    %v70 = vpack.c.b16 %v60, %v59
    %v71 = vpack.c.b16 %v62, %v61
    %v72 = vpack.c.b16 %v64, %v63
    %v77 = vunpack.c.l.b16 %v29
    %v78 = vunpack.c.l.b16 %v30
    %v79 = vunpack.c.l.b16 %v31
    %v80 = vunpack.c.l.b16 %v32
    %v81 = vpack.c.b16 %v78, %v77
    %v82 = vpack.c.b16 %v80, %v79
    %vm85 = vcmask 261120
    %v87 = vsel %vm85, %v65, 0
    %v90 = vsel %vm85, %v66, 0
    %v93 = vsel %vm85, %v67, 0
    %v96 = vsel %vm85, %v68, 0
    %v99 = vsel %vm85, %v69, 0
    %v102 = vsel %vm85, %v70, 0
    %v105 = vsel %vm85, %v71, 0
    %v108 = vsel %vm85, %v72, 0
    %110 = vmatprep.subr.bf16.mxu0 0
    %111 = vmatpush1.bf16.msra.mxu0 %v81
    %112 = vmatprep.subr.bf16.mxu0 0
    %113 = vmatpush1.bf16.msra.mxu0 %v82
    %114 = vmatprep.subr.bf16.mxu0 0
    %115 = vmatpush1.bf16.msra.mxu0 0
    %116 = vmatprep.subr.bf16.mxu0 0
    %117 = vmatpush1.bf16.msra.mxu0 0
    %118 = vmatprep.subr.bf16.mxu0 0
    %119 = vmatpush1.bf16.msra.mxu0 0
    %120 = vmatprep.subr.bf16.mxu0 0
    %121 = vmatpush1.bf16.msra.mxu0 0
    %122 = vmatprep.subr.bf16.mxu0 0
    %123 = vmatpush1.bf16.msra.mxu0 0
    %124 = vmatprep.subr.bf16.mxu0 0
    %125 = vmatpush1.bf16.msra.mxu0 0
    %126 = vmatprep.subr.bf16.mxu0 0
    %127 = vmatpush1.bf16.msra.mxu0 0
    %128 = vmatprep.subr.bf16.mxu0 0
    %129 = vmatpush1.bf16.msra.mxu0 0
    %130 = vmatprep.subr.bf16.mxu0 0
    %131 = vmatpush1.bf16.msra.mxu0 0
    %132 = vmatprep.subr.bf16.mxu0 0
    %133 = vmatpush1.bf16.msra.mxu0 0
    %134 = vmatprep.subr.bf16.mxu0 0
    %135 = vmatpush1.bf16.msra.mxu0 0
    %136 = vmatprep.subr.bf16.mxu0 0
    %137 = vmatpush1.bf16.msra.mxu0 0
    %138 = vmatprep.subr.bf16.mxu0 0
    %139 = vmatpush1.bf16.msra.mxu0 0
    %140 = vmatprep.subr.bf16.mxu0 0
    %141 = vmatpush1.bf16.msra.mxu0 0
    %142 = vmatprep.mubr.bf16.mxu0 0
    %143 = vmatmul.mubr.bf16.gmra.mrb[0].mxu0 %v87
    %v144 = vpop.f32.mrb[0].mxu0
    %v145 = vadd.f32 0.0, %v144
    %v146 = vpop.f32.mrb[0].mxu0
    %v147 = vpop.f32.mrb[0].mxu0
    %v148 = vadd.f32 0.0, %v147
    %v149 = vpop.f32.mrb[0].mxu0
    %150 = vmatprep.mubr.bf16.mxu0 0
    %151 = vmatmul.mubr.bf16.gmra.mrb[0].mxu0 %v90
    %v152 = vpop.f32.mrb[0].mxu0
    %v153 = vadd.f32 0.0, %v152
    %v154 = vpop.f32.mrb[0].mxu0
    %v155 = vpop.f32.mrb[0].mxu0
    %v156 = vadd.f32 0.0, %v155
    %v157 = vpop.f32.mrb[0].mxu0
    %158 = vmatprep.mubr.bf16.mxu0 0
    %159 = vmatmul.mubr.bf16.gmra.mrb[0].mxu0 %v93
    %v160 = vpop.f32.mrb[0].mxu0
    %v161 = vadd.f32 0.0, %v160
    %v162 = vpop.f32.mrb[0].mxu0
    %v163 = vpop.f32.mrb[0].mxu0
    %v164 = vadd.f32 0.0, %v163
    %v165 = vpop.f32.mrb[0].mxu0
    %166 = vmatprep.mubr.bf16.mxu0 0
    %167 = vmatmul.mubr.bf16.gmra.mrb[0].mxu0 %v96
    %v168 = vpop.f32.mrb[0].mxu0
    %v169 = vadd.f32 0.0, %v168
    %v170 = vpop.f32.mrb[0].mxu0
    %v171 = vpop.f32.mrb[0].mxu0
    %v172 = vadd.f32 0.0, %v171
    %v173 = vpop.f32.mrb[0].mxu0
    %174 = vmatprep.mubr.bf16.mxu0 0
    %175 = vmatmul.mubr.bf16.gmra.mrb[0].mxu0 %v99
    %v176 = vpop.f32.mrb[0].mxu0
    %v177 = vadd.f32 0.0, %v176
    %v178 = vpop.f32.mrb[0].mxu0
    %v179 = vpop.f32.mrb[0].mxu0
    %v180 = vadd.f32 0.0, %v179
    %v181 = vpop.f32.mrb[0].mxu0
    %182 = vmatprep.mubr.bf16.mxu0 0
    %183 = vmatmul.mubr.bf16.gmra.mrb[0].mxu0 %v102
    %v184 = vpop.f32.mrb[0].mxu0
    %v185 = vadd.f32 0.0, %v184
    %v186 = vpop.f32.mrb[0].mxu0
    %v187 = vpop.f32.mrb[0].mxu0
    %v188 = vadd.f32 0.0, %v187
    %v189 = vpop.f32.mrb[0].mxu0
    %190 = vmatprep.mubr.bf16.mxu0 0
    %191 = vmatmul.mubr.bf16.gmra.mrb[0].mxu0 %v105
    %v192 = vpop.f32.mrb[0].mxu0
    %v193 = vadd.f32 0.0, %v192
    %v194 = vpop.f32.mrb[0].mxu0
    %v195 = vpop.f32.mrb[0].mxu0
    %v196 = vadd.f32 0.0, %v195
    %v197 = vpop.f32.mrb[0].mxu0
    %198 = vmatprep.mubr.bf16.mxu0 0
    %199 = vmatmul.mubr.bf16.gmra.mrb[0].mxu0 %v108
    %v200 = vpop.f32.mrb[0].mxu0
    %v201 = vadd.f32 0.0, %v200
    %v202 = vpop.f32.mrb[0].mxu0
    %v203 = vpop.f32.mrb[0].mxu0
    %v204 = vadd.f32 0.0, %v203
    %v205 = vpop.f32.mrb[0].mxu0
    %206 = vdwg.mxu0
    %v207 = vpack.c.bf16 %v148, %v145
    %v208 = vpack.c.bf16 %v156, %v153
    %v209 = vpack.c.bf16 %v164, %v161
    %v210 = vpack.c.bf16 %v172, %v169
    %v211 = vpack.c.bf16 %v180, %v177
    %v212 = vpack.c.bf16 %v188, %v185
    %v213 = vpack.c.bf16 %v196, %v193
    %v214 = vpack.c.bf16 %v204, %v201
    %v223 = vunpack.c.l.b16 %v207
    %v224 = vunpack.c.h.b16 %v207
    %v225 = vunpack.c.l.b16 %v208
    %v226 = vunpack.c.h.b16 %v208
    %v227 = vunpack.c.l.b16 %v209
    %v228 = vunpack.c.h.b16 %v209
    %v229 = vunpack.c.l.b16 %v210
    %v230 = vunpack.c.h.b16 %v210
    %v231 = vunpack.c.l.b16 %v211
    %v232 = vunpack.c.h.b16 %v211
    %v233 = vunpack.c.l.b16 %v212
    %v234 = vunpack.c.h.b16 %v212
    %v235 = vunpack.c.l.b16 %v213
    %v236 = vunpack.c.h.b16 %v213
    %v237 = vunpack.c.l.b16 %v214
    %v238 = vunpack.c.h.b16 %v214
    %v239 = vpack.c.b16 %v223, %v223
    %v240 = vpack.c.b16 %v224, %v224
    %v241 = vpack.c.b16 %v225, %v225
    %v242 = vpack.c.b16 %v226, %v226
    %v243 = vpack.c.b16 %v227, %v227
    %v244 = vpack.c.b16 %v228, %v228
    %v245 = vpack.c.b16 %v229, %v229
    %v246 = vpack.c.b16 %v230, %v230
    %v247 = vpack.c.b16 %v231, %v231
    %v248 = vpack.c.b16 %v232, %v232
    %v249 = vpack.c.b16 %v233, %v233
    %v250 = vpack.c.b16 %v234, %v234
    %v251 = vpack.c.b16 %v235, %v235
    %v252 = vpack.c.b16 %v236, %v236
    %v253 = vpack.c.b16 %v237, %v237
    %v254 = vpack.c.b16 %v238, %v238
    %271 = vst [vmem:[#allocation2] sm:$0xf] %v239
    %272 = vst [vmem:[#allocation2 + $0x4] sm:$0xf] %v240
    %273 = vst [vmem:[#allocation2 + $0x8] sm:$0xf] %v241
    %274 = vst [vmem:[#allocation2 + $0xc] sm:$0xf] %v242
    %275 = vst [vmem:[#allocation2 + $0x10] sm:$0xf] %v243
    %276 = vst [vmem:[#allocation2 + $0x14] sm:$0xf] %v244
    %277 = vst [vmem:[#allocation2 + $0x18] sm:$0xf] %v245
    %278 = vst [vmem:[#allocation2 + $0x1c] sm:$0xf] %v246
    %279 = vst [vmem:[#allocation2 + $0x20] sm:$0xf] %v247
    %280 = vst [vmem:[#allocation2 + $0x24] sm:$0xf] %v248
    %281 = vst [vmem:[#allocation2 + $0x28] sm:$0xf] %v249
    %282 = vst [vmem:[#allocation2 + $0x2c] sm:$0xf] %v250
    %283 = vst [vmem:[#allocation2 + $0x30] sm:$0xf] %v251
    %284 = vst [vmem:[#allocation2 + $0x34] sm:$0xf] %v252
    %285 = vst [vmem:[#allocation2 + $0x38] sm:$0xf] %v253
    %286 = vst [vmem:[#allocation2 + $0x3c] sm:$0xf] %v254
    // Predicated region
    $region10: #{tpu_custom_call.1} parent=1 // pred_check
      _
    $region11: #{tpu_custom_call.1} parent=1 // pred_check_branch
      %288 = sbr.rel (0) target = $region13
    $region12: #{tpu_custom_call.1} parent=1 // pred_region
      %s290 = ssub.s32 1024, 1024
      %291 = vsyncadd [#allocation3], %s290
      %s292 = sshll.u32 [#allocation2], 4
      %s293 = int_to_ptr.vmem [resolvable:$true] %s292
      %298 = dma.vmem_to_hbm [thread:$0]  %s293, 1024, %s2, [#allocation3], 64, 64, 4
    $region13: #{tpu_custom_call.1} parent=1 // pred_fallthru
      _
    // Predicated region
    $region14: #{tpu_custom_call.1} parent=1 // pred_check
      _
    $region15: #{tpu_custom_call.1} parent=1 // pred_check_branch
      %300 = sbr.rel (0) target = $region17
    $region16: #{tpu_custom_call.1} parent=1 // pred_region
      %301 = dma.done [#allocation3], 1024
    $region17: #{tpu_custom_call.1} parent=1 // pred_fallthru
      _
    %302 = vsyncpa [#allocation3], 1

</llo_original>
